<compile_context>
chip_gen: v5e
topology: v5e:2x2
jax: 0.10.0
libtpu: 0.0.40
codegen_flags: <defaults>
</compile_context>

<pallas_src>
import functools

import jax
import jax.numpy as jnp
from jax.experimental import pallas as pl
from jax.experimental.pallas import tpu as pltpu

STATE_SIZE = 5        # len(state_bins)
ACTION_SIZE = 4       # synthetic choice (module takes it as a ctor arg)
HIDDEN = 64

# Padded / augmented sizes.
PAD_STATE = 8         # 5 real + 1 ones-column + 2 zero
PAD_HIDDEN = 128      # 64 real + 1 ones-carrier + 63 zero
PAD_ACTION = 128      # 4 real + 124 zero (lane-dense output)
ONES_IN = STATE_SIZE  # index of the ones column in the padded input
ONES_HID = HIDDEN     # index of the ones-carrier column in the padded hidden

BATCH = 256           # >= 128, multiple of the 128-row batch tile
TILE_B = 128


def dqn_kernel(x_ref, w1_ref, w2_ref, w3_ref, o_ref):
    # fc1 + relu (bias folded into w1 via the ones column of x)
    h1 = jnp.maximum(
        jnp.dot(x_ref[...], w1_ref[...], preferred_element_type=jnp.float32), 0.0)
    # fc2 + relu (bias folded into w2; ones column propagated by w1[ONES_IN, ONES_HID] = 1)
    h2 = jnp.maximum(
        jnp.dot(h1, w2_ref[...], preferred_element_type=jnp.float32), 0.0)
    # fc3 (bias folded into w3), lane-dense padded output
    o_ref[...] = jnp.dot(
        h2, w3_ref[...], preferred_element_type=jnp.float32).astype(o_ref.dtype)


@functools.partial(jax.jit, static_argnames=("tb",))
def dqn_forward(x, packed, tb=TILE_B):
    """x: (B, STATE_SIZE) f32.  packed: (W1, W2, W3) padded/augmented weights."""
    W1, W2, W3 = packed
    B = x.shape[0]
    Bp = ((B + tb - 1) // tb) * tb

    # Pad features to PAD_STATE, insert the constant ones column, pad batch to a
    # multiple of the tile size (padded rows produce garbage-free zeros+bias and
    # are sliced away below).
    xp = jnp.zeros((Bp, PAD_STATE), jnp.float32)
    xp = xp.at[:B, :STATE_SIZE].set(x.astype(jnp.float32))
    xp = xp.at[:, ONES_IN].set(1.0)

    out_padded = pl.pallas_call(
        dqn_kernel,
        out_shape=jax.ShapeDtypeStruct((Bp, PAD_ACTION), jnp.float32),
        grid_spec=pltpu.PrefetchScalarGridSpec(
            num_scalar_prefetch=0,
            grid=(Bp // tb,),
            in_specs=[
                pl.BlockSpec((tb, PAD_STATE), lambda i: (i, 0)),
                pl.BlockSpec((PAD_STATE, PAD_HIDDEN), lambda i: (0, 0)),
                pl.BlockSpec((PAD_HIDDEN, PAD_HIDDEN), lambda i: (0, 0)),
                pl.BlockSpec((PAD_HIDDEN, PAD_ACTION), lambda i: (0, 0)),
            ],
            out_specs=pl.BlockSpec((tb, PAD_ACTION), lambda i: (i, 0)),
        ),
        compiler_params=pltpu.CompilerParams(
            dimension_semantics=("parallel",)),
    )(xp, W1, W2, W3)

    return out_padded[:B, :ACTION_SIZE]


def init_params(key):
    """Deterministic init mimicking torch.nn.Linear default: U(-1/sqrt(fan_in), 1/sqrt(fan_in)).

    Weights are stored transposed vs PyTorch: (in_features, out_features), so
    y = x @ W + b matches torch's x @ W.T + b.
    """
    keys = jax.random.split(key, 6)

    def linear(kw, kb, fan_in, fan_out):
        bound = 1.0 / jnp.sqrt(jnp.float32(fan_in))
        w = jax.random.uniform(kw, (fan_in, fan_out), jnp.float32, -bound, bound)
        b = jax.random.uniform(kb, (fan_out,), jnp.float32, -bound, bound)
        return w, b

    w1, b1 = linear(keys[0], keys[1], STATE_SIZE, HIDDEN)
    w2, b2 = linear(keys[2], keys[3], HIDDEN, HIDDEN)
    w3, b3 = linear(keys[4], keys[5], HIDDEN, ACTION_SIZE)
    return (w1, b1, w2, b2, w3, b3)


def pack_params(params):
    """Zero-pad to vreg-friendly shapes and fold biases in as an extra row.

    A single 1.0 at (ONES_IN, ONES_HID) of W1 and (ONES_HID, ONES_HID) of W2
    keeps a constant 1.0 flowing through the hidden layers (relu(1) == 1), so
    every layer's bias rides on the matmul for free.
    """
    w1, b1, w2, b2, w3, b3 = params

    W1 = jnp.zeros((PAD_STATE, PAD_HIDDEN), jnp.float32)
    W1 = W1.at[:STATE_SIZE, :HIDDEN].set(w1)
    W1 = W1.at[ONES_IN, :HIDDEN].set(b1)
    W1 = W1.at[ONES_IN, ONES_HID].set(1.0)

    W2 = jnp.zeros((PAD_HIDDEN, PAD_HIDDEN), jnp.float32)
    W2 = W2.at[:HIDDEN, :HIDDEN].set(w2)
    W2 = W2.at[ONES_HID, :HIDDEN].set(b2)
    W2 = W2.at[ONES_HID, ONES_HID].set(1.0)

    W3 = jnp.zeros((PAD_HIDDEN, PAD_ACTION), jnp.float32)
    W3 = W3.at[:HIDDEN, :ACTION_SIZE].set(w3)
    W3 = W3.at[ONES_HID, :ACTION_SIZE].set(b3)

    return (W1, W2, W3)


if __name__ == "__main__":
    key = jax.random.PRNGKey(0)
    k_param, k_x = jax.random.split(key)
    params = init_params(k_param)
    packed = pack_params(params)
    x = jax.random.normal(k_x, (BATCH, STATE_SIZE), jnp.float32)

    out = dqn_forward(x, packed)
    out = jax.block_until_ready(out)

    # Reference check in plain JAX (same math as the PyTorch module, unpadded).
    w1, b1, w2, b2, w3, b3 = params
    ref = jnp.maximum(x @ w1 + b1, 0.0)
    ref = jnp.maximum(ref @ w2 + b2, 0.0)
    ref = ref @ w3 + b3

    assert out.shape == (BATCH, ACTION_SIZE)
    assert jnp.allclose(out, ref, atol=1e-4, rtol=1e-5), (
        float(jnp.max(jnp.abs(out - ref))))

    print("KERNEL_OK")
</pallas_src>

<mosaic_0001>
module attributes {stable_mosaic.version = 11 : i64} {
  func.func @dqn_kernel(%arg0: i32, %arg1: memref<128x8xf32, #tpu.memory_space<vmem>>, %arg2: memref<8x128xf32, #tpu.memory_space<vmem>>, %arg3: memref<128x128xf32, #tpu.memory_space<vmem>>, %arg4: memref<128x128xf32, #tpu.memory_space<vmem>>, %arg5: memref<128x128xf32, #tpu.memory_space<vmem>>) attributes {dimension_semantics = [#tpu.dimension_semantics<parallel>], iteration_bounds = array<i64: 2>, scalar_prefetch = 0 : i64, scratch_operands = 0 : i64, tpu.core_type = #tpu.core_type<tc>, window_params = [{transform_indices = @transform_0, window_bounds = array<i64: 128, 8>}, {pipeline_mode = #tpu.pipeline_mode<synchronous>, transform_indices = @transform_1, window_bounds = array<i64: 8, 128>}, {pipeline_mode = #tpu.pipeline_mode<synchronous>, transform_indices = @transform_2, window_bounds = array<i64: 128, 128>}, {pipeline_mode = #tpu.pipeline_mode<synchronous>, transform_indices = @transform_3, window_bounds = array<i64: 128, 128>}, {transform_indices = @transform_4, window_bounds = array<i64: 128, 128>}]} {
    %c0 = arith.constant 0 : index
    %c0_0 = arith.constant 0 : index
    %0 = vector.load %arg1[%c0, %c0_0] : memref<128x8xf32, #tpu.memory_space<vmem>>, vector<128x8xf32>
    %c0_1 = arith.constant 0 : index
    %c0_2 = arith.constant 0 : index
    %1 = vector.load %arg2[%c0_1, %c0_2] : memref<8x128xf32, #tpu.memory_space<vmem>>, vector<8x128xf32>
    %cst = arith.constant dense<0.000000e+00> : vector<128x128xf32>
    %2 = tpu.matmul %0, %1, %cst {dimension_numbers = #tpu.dot_dimension_numbers<[1], [0], [0], [1], [0, 0, 1, 1], [], []>} : vector<128x8xf32>, vector<8x128xf32>, vector<128x128xf32> -> vector<128x128xf32>
    %cst_3 = arith.constant 0.000000e+00 : f32
    %3 = vector.broadcast %cst_3 : f32 to vector<128x128xf32>
    %4 = arith.maximumf %2, %3 : vector<128x128xf32>
    %c0_4 = arith.constant 0 : index
    %c0_5 = arith.constant 0 : index
    %5 = vector.load %arg3[%c0_4, %c0_5] : memref<128x128xf32, #tpu.memory_space<vmem>>, vector<128x128xf32>
    %cst_6 = arith.constant dense<0.000000e+00> : vector<128x128xf32>
    %6 = tpu.matmul %4, %5, %cst_6 {dimension_numbers = #tpu.dot_dimension_numbers<[1], [0], [0], [1], [0, 0, 1, 1], [], []>} : vector<128x128xf32>, vector<128x128xf32>, vector<128x128xf32> -> vector<128x128xf32>
    %cst_7 = arith.constant 0.000000e+00 : f32
    %7 = vector.broadcast %cst_7 : f32 to vector<128x128xf32>
    %8 = arith.maximumf %6, %7 : vector<128x128xf32>
    %c0_8 = arith.constant 0 : index
    %c0_9 = arith.constant 0 : index
    %9 = vector.load %arg4[%c0_8, %c0_9] : memref<128x128xf32, #tpu.memory_space<vmem>>, vector<128x128xf32>
    %cst_10 = arith.constant dense<0.000000e+00> : vector<128x128xf32>
    %10 = tpu.matmul %8, %9, %cst_10 {dimension_numbers = #tpu.dot_dimension_numbers<[1], [0], [0], [1], [0, 0, 1, 1], [], []>} : vector<128x128xf32>, vector<128x128xf32>, vector<128x128xf32> -> vector<128x128xf32>
    %c0_11 = arith.constant 0 : index
    %c0_12 = arith.constant 0 : index
    %11 = vector.load %arg5[%c0_11, %c0_12] : memref<128x128xf32, #tpu.memory_space<vmem>>, vector<128x128xf32>
    tpu.vector_store %arg5[%c0_11, %c0_12], %10 {strides = array<i32>} : memref<128x128xf32, #tpu.memory_space<vmem>>, vector<128x128xf32>,
    return
  }
  func.func @transform_0(%arg0: i32) -> (i32, i32) {
    %c0_i32 = arith.constant 0 : i32
    %c0_i32_0 = arith.constant 0 : i32
    return %arg0, %c0_i32 : i32, i32
  }
  func.func @transform_1(%arg0: i32) -> (i32, i32) {
    %c0_i32 = arith.constant 0 : i32
    %c0_i32_0 = arith.constant 0 : i32
    %c0_i32_1 = arith.constant 0 : i32
    return %c0_i32, %c0_i32_0 : i32, i32
  }
  func.func @transform_2(%arg0: i32) -> (i32, i32) {
    %c0_i32 = arith.constant 0 : i32
    %c0_i32_0 = arith.constant 0 : i32
    %c0_i32_1 = arith.constant 0 : i32
    return %c0_i32, %c0_i32_0 : i32, i32
  }
  func.func @transform_3(%arg0: i32) -> (i32, i32) {
    %c0_i32 = arith.constant 0 : i32
    %c0_i32_0 = arith.constant 0 : i32
    %c0_i32_1 = arith.constant 0 : i32
    return %c0_i32, %c0_i32_0 : i32, i32
  }
  func.func @transform_4(%arg0: i32) -> (i32, i32) {
    %c0_i32 = arith.constant 0 : i32
    %c0_i32_0 = arith.constant 0 : i32
    return %arg0, %c0_i32 : i32, i32
  }
}

</mosaic_0001>

<llo_original>
// kernel: dqn_forward.1
$region0: #{dqn_forward.1}
  #allocation0 [shape = 'u32[]', space=smem, size = 0x4, offset = 0x4, fixed_abs, tag = 'smem constant byte address 0x4 - core index']
  #allocation1 [shape = 'u32[72,128]{1,0:T(1,128)}', space=vmem, size = 0x9000, scoped, tag = 'internal scratch']
  %s0 = inlined_call_operand.vmem [shape: f32[256,8], index: 0, kind: input, shape index: {}]
  %s1 = inlined_call_operand.vmem [shape: f32[8,128], index: 1, kind: input, shape index: {}]
  %s2 = inlined_call_operand.vmem [shape: f32[128,128], index: 2, kind: input, shape index: {}]
  %s3 = inlined_call_operand.vmem [shape: f32[128,128], index: 3, kind: input, shape index: {}]
  %s4 = inlined_call_operand.vmem [shape: f32[256,128], index: 4, kind: output, shape index: {}]
  %s5 = sld [smem:[#allocation0]]
  $region49: #{dqn_forward.1} parent=0
    _
  %s7 = ssub.s32 1, %s5
  %s8 = scalar_select 0, %s7, %s5
  loop: start=0, step=1, limit=4
  $region2: #{dqn_forward.1} parent=0 // loop_pre_header
    _
  $region3: #{dqn_forward.1} parent=0 // loop_header
    %s10 = sphi 0, %s14
    %p11 = scmp.ge.s32.totalorder %s10, 4
    %s20 = sphi 0, %s22
    %s23 = sphi 0, %s20
    %s24 = sphi 0, %s23
    %s40 = sphi 0, %s24
    %s44 = sphi 0, %s44
    %s46 = sphi 0, %s44
    %s47 = sphi 0, %s46
    %s61 = sphi 0, %s47
    %s65 = sphi 0, %s65
    %s67 = sphi 0, %s65
    %s68 = sphi 0, %s67
    %s82 = sphi 0, %s68
    %s86 = sphi 0, %s86
    %s88 = sphi 0, %s86
    %s89 = sphi 0, %s88
    %s103 = sphi 0, %s89
    %s109 = sphi 0, %s111
    %s112 = sphi 0, %s109
    %s113 = sphi 0, %s112
    %s129 = sphi 0, %s113
  $region4: #{dqn_forward.1} parent=0 // loop_header_branch
    %13 = sbr.rel (%p11) target = $region8
  $region5: #{dqn_forward.1} parent=0 // loop_body
    %s15 = ssub.s32 %s10, 1
    %s16 = ssub.s32 %s10, 2
    %s17 = sadd.s32 %s10, 1
    %s18 = ssub.s32 %s10, %s17
    %p19 = scmp.eq.s32.totalorder %s18, 0
    %s21 = sadd.s32 %s20, 1
    %s22 = scalar_select %p19, %s20, %s21
    %p25 = pneg %p19
    %p26 = scmp.eq.s32.totalorder %s10, 1
    %p27 = por %p25, %p26
    %p28 = scmp.ne.s32.totalorder %s20, %s23
    %p29 = scmp.eq.s32.totalorder %s10, 0
    %p30 = por %p28, %p29
    %p31 = scmp.ne.s32.totalorder %s20, %s23
    %p32 = scmp.eq.s32.totalorder %s15, 1
    %p33 = por %p31, %p32
    %p34 = scmp.ne.s32.totalorder %s23, %s24
    %p35 = scmp.eq.s32.totalorder %s15, 0
    %p36 = por %p34, %p35
    %p37 = scmp.ne.s32.totalorder %s23, %s24
    %p38 = scmp.eq.s32.totalorder %s16, 1
    %p39 = por %p37, %p38
    %p41 = scmp.ne.s32.totalorder %s24, %s40
    %p42 = scmp.eq.s32.totalorder %s16, 0
    %p43 = por %p41, %p42
    %s45 = sadd.s32 %s44, 1
    %p48 = scmp.eq.s32.totalorder %s10, 1
    %p49 = scmp.ne.s32.totalorder %s44, %s46
    %p50 = scmp.eq.s32.totalorder %s10, 0
    %p51 = por %p49, %p50
    %p52 = scmp.ne.s32.totalorder %s44, %s46
    %p53 = scmp.eq.s32.totalorder %s15, 1
    %p54 = por %p52, %p53
    %p55 = scmp.ne.s32.totalorder %s46, %s47
    %p56 = scmp.eq.s32.totalorder %s15, 0
    %p57 = por %p55, %p56
    %p58 = scmp.ne.s32.totalorder %s46, %s47
    %p59 = scmp.eq.s32.totalorder %s16, 1
    %p60 = por %p58, %p59
    %p62 = scmp.ne.s32.totalorder %s47, %s61
    %p63 = scmp.eq.s32.totalorder %s16, 0
    %p64 = por %p62, %p63
    %s66 = sadd.s32 %s65, 1
    %p69 = scmp.eq.s32.totalorder %s10, 1
    %p70 = scmp.ne.s32.totalorder %s65, %s67
    %p71 = scmp.eq.s32.totalorder %s10, 0
    %p72 = por %p70, %p71
    %p73 = scmp.ne.s32.totalorder %s65, %s67
    %p74 = scmp.eq.s32.totalorder %s15, 1
    %p75 = por %p73, %p74
    %p76 = scmp.ne.s32.totalorder %s67, %s68
    %p77 = scmp.eq.s32.totalorder %s15, 0
    %p78 = por %p76, %p77
    %p79 = scmp.ne.s32.totalorder %s67, %s68
    %p80 = scmp.eq.s32.totalorder %s16, 1
    %p81 = por %p79, %p80
    %p83 = scmp.ne.s32.totalorder %s68, %s82
    %p84 = scmp.eq.s32.totalorder %s16, 0
    %p85 = por %p83, %p84
    %s87 = sadd.s32 %s86, 1
    %p90 = scmp.eq.s32.totalorder %s10, 1
    %p91 = scmp.ne.s32.totalorder %s86, %s88
    %p92 = scmp.eq.s32.totalorder %s10, 0
    %p93 = por %p91, %p92
    %p94 = scmp.ne.s32.totalorder %s86, %s88
    %p95 = scmp.eq.s32.totalorder %s15, 1
    %p96 = por %p94, %p95
    %p97 = scmp.ne.s32.totalorder %s88, %s89
    %p98 = scmp.eq.s32.totalorder %s15, 0
    %p99 = por %p97, %p98
    %p100 = scmp.ne.s32.totalorder %s88, %s89
    %p101 = scmp.eq.s32.totalorder %s16, 1
    %p102 = por %p100, %p101
    %p104 = scmp.ne.s32.totalorder %s89, %s103
    %p105 = scmp.eq.s32.totalorder %s16, 0
    %p106 = por %p104, %p105
    %s107 = ssub.s32 %s10, %s17
    %p108 = scmp.eq.s32.totalorder %s107, 0
    %s110 = sadd.s32 %s109, 1
    %s111 = scalar_select %p108, %s109, %s110
    %p114 = pneg %p108
    %p115 = scmp.eq.s32.totalorder %s10, 1
    %p116 = por %p114, %p115
    %p117 = scmp.ne.s32.totalorder %s109, %s112
    %p118 = scmp.eq.s32.totalorder %s10, 0
    %p119 = por %p117, %p118
    %p120 = scmp.ne.s32.totalorder %s109, %s112
    %p121 = scmp.eq.s32.totalorder %s15, 1
    %p122 = por %p120, %p121
    %p123 = scmp.ne.s32.totalorder %s112, %s113
    %p124 = scmp.eq.s32.totalorder %s15, 0
    %p125 = por %p123, %p124
    %p126 = scmp.ne.s32.totalorder %s112, %s113
    %p127 = scmp.eq.s32.totalorder %s16, 1
    %p128 = por %p126, %p127
    %p130 = scmp.ne.s32.totalorder %s113, %s129
    %p131 = scmp.eq.s32.totalorder %s16, 0
    %p132 = por %p130, %p131
    %p133 = scmp.le.s32.totalorder 1, %s10
    %p134 = scmp.lt.s32.totalorder %s10, 3
    %p135 = pnand %p133, %p134
    %p136 = pneg %p135
    // Predicated region
    $region9: #{dqn_forward.1} parent=5 // pred_check
      _
    $region10: #{dqn_forward.1} parent=5 // pred_check_branch
      %138 = sbr.rel (%p135) target = $region12
    $region11: #{dqn_forward.1} parent=5 // pred_region
      %s139 = ssub.s32 %s10, 1
      // Predicated region
      $region13: #{dqn_forward.1} parent=11 // pred_check
        %p140 = pneg %p57
      $region14: #{dqn_forward.1} parent=11 // pred_check_branch
        %142 = sbr.rel (%p140) target = $region16
      $region15: #{dqn_forward.1} parent=11 // pred_region
        _
      $region16: #{dqn_forward.1} parent=11 // pred_fallthru
        _
      // Predicated region
      $region17: #{dqn_forward.1} parent=11 // pred_check
        %p143 = pneg %p78
      $region18: #{dqn_forward.1} parent=11 // pred_check_branch
        %145 = sbr.rel (%p143) target = $region20
      $region19: #{dqn_forward.1} parent=11 // pred_region
        _
      $region20: #{dqn_forward.1} parent=11 // pred_fallthru
        _
      // Predicated region
      $region21: #{dqn_forward.1} parent=11 // pred_check
        %p146 = pneg %p99
      $region22: #{dqn_forward.1} parent=11 // pred_check_branch
        %148 = sbr.rel (%p146) target = $region24
      $region23: #{dqn_forward.1} parent=11 // pred_region
        _
      $region24: #{dqn_forward.1} parent=11 // pred_fallthru
        _
    $region12: #{dqn_forward.1} parent=5 // pred_fallthru
      _
    %p149 = scmp.lt.s32.totalorder %s10, 2
    // Predicated region
    $region25: #{dqn_forward.1} parent=5 // pred_check
      %p150 = pneg %p149
    $region26: #{dqn_forward.1} parent=5 // pred_check_branch
      %152 = sbr.rel (%p150) target = $region28
    $region27: #{dqn_forward.1} parent=5 // pred_region
      // Predicated region
      $region29: #{dqn_forward.1} parent=27 // pred_check
        %p153 = pneg %p30
      $region30: #{dqn_forward.1} parent=27 // pred_check_branch
        %155 = sbr.rel (%p153) target = $region32
      $region31: #{dqn_forward.1} parent=27 // pred_region
        %s156 = smul.u32 16, %s10
        %p157 = scmp.lt.s32.totalorder %s156, 31
        %s158 = scalar_select %p157, %s156, 31
        %s159 = smul.addr %s158, 8
        %s160 = scalar_lea.vmem %s0, %s159
        %s161 = smul.u32 16, %s10
      $region32: #{dqn_forward.1} parent=27 // pred_fallthru
        _
    $region28: #{dqn_forward.1} parent=5 // pred_fallthru
      _
    %p162 = scmp.le.s32.totalorder 1, %s10
    %p163 = scmp.lt.s32.totalorder %s10, 3
    %p164 = pnand %p162, %p163
    %p165 = pneg %p164
    // Predicated region
    $region33: #{dqn_forward.1} parent=5 // pred_check
      _
    $region34: #{dqn_forward.1} parent=5 // pred_check_branch
      %167 = sbr.rel (%p164) target = $region36
    $region35: #{dqn_forward.1} parent=5 // pred_region
      %s168 = ssub.s32 %s10, 1
      %s169 = smul.u32 16, %s15
      %p170 = scmp.lt.s32.totalorder %s169, 31
      %s171 = scalar_select %p170, %s169, 31
      %s172 = smul.addr %s171, 8
      %s173 = scalar_lea.vmem %s0, %s172
      %p174 = pneg %p36
      %p175 = pneg %p33
      %p176 = pneg %p57
      %p177 = pneg %p54
      %p178 = pneg %p78
      %p179 = pneg %p75
      %p180 = pneg %p99
      %p181 = pneg %p96
      %p182 = pneg %p125
      %p183 = pneg %p122
      %s184 = smul.u32 16, %s15
      %p185 = scmp.lt.s32.totalorder %s184, 31
      %s186 = scalar_select %p185, %s184, 31
      %s187 = smul.addr %s186, 8
      %s188 = scalar_lea.vmem %s4, %s187
      %s189 = smul.u32 16, %s15
      %p190 = scmp.lt.s32.totalorder %s189, 31
      %s191 = scalar_select %p190, %s189, 31
      %s192 = smul.addr %s191, 8
      %s193 = scalar_lea.vmem %s0, %s192
      %s194 = smul.u32 16, %s15
      %s195 = smul.u32 16, %s15
      %p196 = scmp.lt.s32.totalorder %s195, 31
      %s197 = scalar_select %p196, %s195, 31
      %s198 = smul.addr %s197, 8
      %s199 = scalar_lea.vmem %s4, %s198
      %s200 = smul.u32 16, %s15
      %v201 = vld [vmem:[%s193] sm:$0xff]
      %v202 = vld [vmem:[%s193 + $0x8] sm:$0xff]
      %v203 = vld [vmem:[%s193 + $0x10] sm:$0xff]
      %v204 = vld [vmem:[%s193 + $0x18] sm:$0xff]
      %v205 = vld [vmem:[%s193 + $0x20] sm:$0xff]
      %v206 = vld [vmem:[%s193 + $0x28] sm:$0xff]
      %v207 = vld [vmem:[%s193 + $0x30] sm:$0xff]
      %v208 = vld [vmem:[%s193 + $0x38] sm:$0xff]
      %v209 = vld [vmem:[%s193 + $0x40] sm:$0xff]
      %v210 = vld [vmem:[%s193 + $0x48] sm:$0xff]
      %v211 = vld [vmem:[%s193 + $0x50] sm:$0xff]
      %v212 = vld [vmem:[%s193 + $0x58] sm:$0xff]
      %v213 = vld [vmem:[%s193 + $0x60] sm:$0xff]
      %v214 = vld [vmem:[%s193 + $0x68] sm:$0xff]
      %v215 = vld [vmem:[%s193 + $0x70] sm:$0xff]
      %v216 = vld [vmem:[%s193 + $0x78] sm:$0xff]
      %v217 = vld [vmem:[%s1] sm:$0xff]
      %vm218 = vcmask 64512
      %v220 = vsel %vm218, %v201, 0
      %v223 = vsel %vm218, %v202, 0
      %v226 = vsel %vm218, %v203, 0
      %v229 = vsel %vm218, %v204, 0
      %v232 = vsel %vm218, %v205, 0
      %v235 = vsel %vm218, %v206, 0
      %v238 = vsel %vm218, %v207, 0
      %v241 = vsel %vm218, %v208, 0
      %v244 = vsel %vm218, %v209, 0
      %v247 = vsel %vm218, %v210, 0
      %v250 = vsel %vm218, %v211, 0
      %v253 = vsel %vm218, %v212, 0
      %v256 = vsel %vm218, %v213, 0
      %v259 = vsel %vm218, %v214, 0
      %v262 = vsel %vm218, %v215, 0
      %v265 = vsel %vm218, %v216, 0
      %267 = vmatpush.msra.mxu0 0.0
      %268 = vmatpush.msra.mxu0 0.0
      %269 = vmatpush.msra.mxu0 0.0
      %270 = vmatpush.msra.mxu0 0.0
      %271 = vmatpush.msra.mxu0 0.0
      %272 = vmatpush.msra.mxu0 0.0
      %273 = vmatpush.msra.mxu0 0.0
      %274 = vmatpush.msra.mxu0 0.0
      %275 = vmatpush.msra.mxu0 0.0
      %276 = vmatpush.msra.mxu0 0.0
      %277 = vmatpush.msra.mxu0 0.0
      %278 = vmatpush.msra.mxu0 0.0
      %279 = vmatpush.msra.mxu0 0.0
      %280 = vmatpush.msra.mxu0 0.0
      %281 = vmatpush.msra.mxu0 0.0
      %282 = vmatpush.msra.mxu0 %v217
      %283 = vmatmul.f32.gmra.mxu0 %v220
      %v284 = vpop.f32.mrf.mxu0
      %v285 = vadd.f32 0.0, %v284
      %286 = vmatmul.f32.gmra.mxu0 %v223
      %v287 = vpop.f32.mrf.mxu0
      %v288 = vadd.f32 0.0, %v287
      %289 = vmatmul.f32.gmra.mxu0 %v226
      %v290 = vpop.f32.mrf.mxu0
      %v291 = vadd.f32 0.0, %v290
      %292 = vmatmul.f32.gmra.mxu0 %v229
      %v293 = vpop.f32.mrf.mxu0
      %v294 = vadd.f32 0.0, %v293
      %295 = vmatmul.f32.gmra.mxu0 %v232
      %v296 = vpop.f32.mrf.mxu0
      %v297 = vadd.f32 0.0, %v296
      %298 = vmatmul.f32.gmra.mxu0 %v235
      %v299 = vpop.f32.mrf.mxu0
      %v300 = vadd.f32 0.0, %v299
      %301 = vmatmul.f32.gmra.mxu0 %v238
      %v302 = vpop.f32.mrf.mxu0
      %v303 = vadd.f32 0.0, %v302
      %304 = vmatmul.f32.gmra.mxu0 %v241
      %v305 = vpop.f32.mrf.mxu0
      %v306 = vadd.f32 0.0, %v305
      %307 = vmatmul.f32.gmra.mxu0 %v244
      %v308 = vpop.f32.mrf.mxu0
      %v309 = vadd.f32 0.0, %v308
      %310 = vmatmul.f32.gmra.mxu0 %v247
      %v311 = vpop.f32.mrf.mxu0
      %v312 = vadd.f32 0.0, %v311
      %313 = vmatmul.f32.gmra.mxu0 %v250
      %v314 = vpop.f32.mrf.mxu0
      %v315 = vadd.f32 0.0, %v314
      %316 = vmatmul.f32.gmra.mxu0 %v253
      %v317 = vpop.f32.mrf.mxu0
      %v318 = vadd.f32 0.0, %v317
      %319 = vmatmul.f32.gmra.mxu0 %v256
      %v320 = vpop.f32.mrf.mxu0
      %v321 = vadd.f32 0.0, %v320
      %322 = vmatmul.f32.gmra.mxu0 %v259
      %v323 = vpop.f32.mrf.mxu0
      %v324 = vadd.f32 0.0, %v323
      %325 = vmatmul.f32.gmra.mxu0 %v262
      %v326 = vpop.f32.mrf.mxu0
      %v327 = vadd.f32 0.0, %v326
      %328 = vmatmul.f32.gmra.mxu0 %v265
      %v329 = vpop.f32.mrf.mxu0
      %v330 = vadd.f32 0.0, %v329
      %331 = vdwg.mxu0
      %v332 = vmax.f32 %v285, 0.0
      %v333 = vmax.f32 %v288, 0.0
      %v334 = vmax.f32 %v291, 0.0
      %v335 = vmax.f32 %v294, 0.0
      %v336 = vmax.f32 %v297, 0.0
      %v337 = vmax.f32 %v300, 0.0
      %v338 = vmax.f32 %v303, 0.0
      %v339 = vmax.f32 %v306, 0.0
      %v340 = vmax.f32 %v309, 0.0
      %v341 = vmax.f32 %v312, 0.0
      %v342 = vmax.f32 %v315, 0.0
      %v343 = vmax.f32 %v318, 0.0
      %v344 = vmax.f32 %v321, 0.0
      %v345 = vmax.f32 %v324, 0.0
      %v346 = vmax.f32 %v327, 0.0
      %v347 = vmax.f32 %v330, 0.0
      %v348 = vld [vmem:[%s2] sm:$0xff]
      %v349 = vld [vmem:[%s2 + $0x8] sm:$0xff]
      %v350 = vld [vmem:[%s2 + $0x10] sm:$0xff]
      %v351 = vld [vmem:[%s2 + $0x18] sm:$0xff]
      %v352 = vld [vmem:[%s2 + $0x20] sm:$0xff]
      %v353 = vld [vmem:[%s2 + $0x28] sm:$0xff]
      %v354 = vld [vmem:[%s2 + $0x30] sm:$0xff]
      %v355 = vld [vmem:[%s2 + $0x38] sm:$0xff]
      %v356 = vld [vmem:[%s2 + $0x40] sm:$0xff]
      %v357 = vld [vmem:[%s2 + $0x48] sm:$0xff]
      %v358 = vld [vmem:[%s2 + $0x50] sm:$0xff]
      %v359 = vld [vmem:[%s2 + $0x58] sm:$0xff]
      %v360 = vld [vmem:[%s2 + $0x60] sm:$0xff]
      %v361 = vld [vmem:[%s2 + $0x68] sm:$0xff]
      %v362 = vld [vmem:[%s2 + $0x70] sm:$0xff]
      %v363 = vld [vmem:[%s2 + $0x78] sm:$0xff]
      %364 = vmatpush.msra.mxu0 %v363
      %365 = vmatpush.msra.mxu0 %v362
      %366 = vmatpush.msra.mxu0 %v361
      %367 = vmatpush.msra.mxu0 %v360
      %368 = vmatpush.msra.mxu0 %v359
      %369 = vmatpush.msra.mxu0 %v358
      %370 = vmatpush.msra.mxu0 %v357
      %371 = vmatpush.msra.mxu0 %v356
      %372 = vmatpush.msra.mxu0 %v355
      %373 = vmatpush.msra.mxu0 %v354
      %374 = vmatpush.msra.mxu0 %v353
      %375 = vmatpush.msra.mxu0 %v352
      %376 = vmatpush.msra.mxu0 %v351
      %377 = vmatpush.msra.mxu0 %v350
      %378 = vmatpush.msra.mxu0 %v349
      %379 = vmatpush.msra.mxu0 %v348
      %380 = vmatmul.f32.gmra.mxu0 %v332
      %v381 = vpop.f32.mrf.mxu0
      %v382 = vadd.f32 0.0, %v381
      %383 = vmatmul.f32.gmra.mxu0 %v333
      %v384 = vpop.f32.mrf.mxu0
      %v385 = vadd.f32 0.0, %v384
      %386 = vmatmul.f32.gmra.mxu0 %v334
      %v387 = vpop.f32.mrf.mxu0
      %v388 = vadd.f32 0.0, %v387
      %389 = vmatmul.f32.gmra.mxu0 %v335
      %v390 = vpop.f32.mrf.mxu0
      %v391 = vadd.f32 0.0, %v390
      %392 = vmatmul.f32.gmra.mxu0 %v336
      %v393 = vpop.f32.mrf.mxu0
      %v394 = vadd.f32 0.0, %v393
      %395 = vmatmul.f32.gmra.mxu0 %v337
      %v396 = vpop.f32.mrf.mxu0
      %v397 = vadd.f32 0.0, %v396
      %398 = vmatmul.f32.gmra.mxu0 %v338
      %v399 = vpop.f32.mrf.mxu0
      %v400 = vadd.f32 0.0, %v399
      %401 = vmatmul.f32.gmra.mxu0 %v339
      %v402 = vpop.f32.mrf.mxu0
      %v403 = vadd.f32 0.0, %v402
      %404 = vmatmul.f32.gmra.mxu0 %v340
      %v405 = vpop.f32.mrf.mxu0
      %v406 = vadd.f32 0.0, %v405
      %407 = vmatmul.f32.gmra.mxu0 %v341
      %v408 = vpop.f32.mrf.mxu0
      %v409 = vadd.f32 0.0, %v408
      %410 = vmatmul.f32.gmra.mxu0 %v342
      %v411 = vpop.f32.mrf.mxu0
      %v412 = vadd.f32 0.0, %v411
      %413 = vmatmul.f32.gmra.mxu0 %v343
      %v414 = vpop.f32.mrf.mxu0
      %v415 = vadd.f32 0.0, %v414
      %416 = vmatmul.f32.gmra.mxu0 %v344
      %v417 = vpop.f32.mrf.mxu0
      %v418 = vadd.f32 0.0, %v417
      %419 = vmatmul.f32.gmra.mxu0 %v345
      %v420 = vpop.f32.mrf.mxu0
      %v421 = vadd.f32 0.0, %v420
      %422 = vmatmul.f32.gmra.mxu0 %v346
      %v423 = vpop.f32.mrf.mxu0
      %v424 = vadd.f32 0.0, %v423
      %425 = vmatmul.f32.gmra.mxu0 %v347
      %v426 = vpop.f32.mrf.mxu0
      %v427 = vadd.f32 0.0, %v426
      %428 = vdwg.mxu0
      %v429 = vmax.f32 %v382, 0.0
      %v430 = vmax.f32 %v385, 0.0
      %v431 = vmax.f32 %v388, 0.0
      %v432 = vmax.f32 %v391, 0.0
      %v433 = vmax.f32 %v394, 0.0
      %v434 = vmax.f32 %v397, 0.0
      %v435 = vmax.f32 %v400, 0.0
      %v436 = vmax.f32 %v403, 0.0
      %v437 = vmax.f32 %v406, 0.0
      %v438 = vmax.f32 %v409, 0.0
      %v439 = vmax.f32 %v412, 0.0
      %v440 = vmax.f32 %v415, 0.0
      %v441 = vmax.f32 %v418, 0.0
      %v442 = vmax.f32 %v421, 0.0
      %v443 = vmax.f32 %v424, 0.0
      %v444 = vmax.f32 %v427, 0.0
      %v445 = vld [vmem:[%s3] sm:$0xff]
      %v446 = vld [vmem:[%s3 + $0x8] sm:$0xff]
      %v447 = vld [vmem:[%s3 + $0x10] sm:$0xff]
      %v448 = vld [vmem:[%s3 + $0x18] sm:$0xff]
      %v449 = vld [vmem:[%s3 + $0x20] sm:$0xff]
      %v450 = vld [vmem:[%s3 + $0x28] sm:$0xff]
      %v451 = vld [vmem:[%s3 + $0x30] sm:$0xff]
      %v452 = vld [vmem:[%s3 + $0x38] sm:$0xff]
      %v453 = vld [vmem:[%s3 + $0x40] sm:$0xff]
      %v454 = vld [vmem:[%s3 + $0x48] sm:$0xff]
      %v455 = vld [vmem:[%s3 + $0x50] sm:$0xff]
      %v456 = vld [vmem:[%s3 + $0x58] sm:$0xff]
      %v457 = vld [vmem:[%s3 + $0x60] sm:$0xff]
      %v458 = vld [vmem:[%s3 + $0x68] sm:$0xff]
      %v459 = vld [vmem:[%s3 + $0x70] sm:$0xff]
      %v460 = vld [vmem:[%s3 + $0x78] sm:$0xff]
      %461 = vmatpush.msra.mxu0 %v460
      %462 = vmatpush.msra.mxu0 %v459
      %463 = vmatpush.msra.mxu0 %v458
      %464 = vmatpush.msra.mxu0 %v457
      %465 = vmatpush.msra.mxu0 %v456
      %466 = vmatpush.msra.mxu0 %v455
      %467 = vmatpush.msra.mxu0 %v454
      %468 = vmatpush.msra.mxu0 %v453
      %469 = vmatpush.msra.mxu0 %v452
      %470 = vmatpush.msra.mxu0 %v451
      %471 = vmatpush.msra.mxu0 %v450
      %472 = vmatpush.msra.mxu0 %v449
      %473 = vmatpush.msra.mxu0 %v448
      %474 = vmatpush.msra.mxu0 %v447
      %475 = vmatpush.msra.mxu0 %v446
      %476 = vmatpush.msra.mxu0 %v445
      %477 = vmatmul.f32.gmra.mxu0 %v429
      %v478 = vpop.f32.mrf.mxu0
      %v479 = vadd.f32 0.0, %v478
      %480 = vmatmul.f32.gmra.mxu0 %v430
      %v481 = vpop.f32.mrf.mxu0
      %v482 = vadd.f32 0.0, %v481
      %483 = vmatmul.f32.gmra.mxu0 %v431
      %v484 = vpop.f32.mrf.mxu0
      %v485 = vadd.f32 0.0, %v484
      %486 = vmatmul.f32.gmra.mxu0 %v432
      %v487 = vpop.f32.mrf.mxu0
      %v488 = vadd.f32 0.0, %v487
      %489 = vmatmul.f32.gmra.mxu0 %v433
      %v490 = vpop.f32.mrf.mxu0
      %v491 = vadd.f32 0.0, %v490
      %492 = vmatmul.f32.gmra.mxu0 %v434
      %v493 = vpop.f32.mrf.mxu0
      %v494 = vadd.f32 0.0, %v493
      %495 = vmatmul.f32.gmra.mxu0 %v435
      %v496 = vpop.f32.mrf.mxu0
      %v497 = vadd.f32 0.0, %v496
      %498 = vmatmul.f32.gmra.mxu0 %v436
      %v499 = vpop.f32.mrf.mxu0
      %v500 = vadd.f32 0.0, %v499
      %501 = vmatmul.f32.gmra.mxu0 %v437
      %v502 = vpop.f32.mrf.mxu0
      %v503 = vadd.f32 0.0, %v502
      %504 = vmatmul.f32.gmra.mxu0 %v438
      %v505 = vpop.f32.mrf.mxu0
      %v506 = vadd.f32 0.0, %v505
      %507 = vmatmul.f32.gmra.mxu0 %v439
      %v508 = vpop.f32.mrf.mxu0
      %v509 = vadd.f32 0.0, %v508
      %510 = vmatmul.f32.gmra.mxu0 %v440
      %v511 = vpop.f32.mrf.mxu0
      %v512 = vadd.f32 0.0, %v511
      %513 = vmatmul.f32.gmra.mxu0 %v441
      %v514 = vpop.f32.mrf.mxu0
      %v515 = vadd.f32 0.0, %v514
      %516 = vmatmul.f32.gmra.mxu0 %v442
      %v517 = vpop.f32.mrf.mxu0
      %v518 = vadd.f32 0.0, %v517
      %519 = vmatmul.f32.gmra.mxu0 %v443
      %v520 = vpop.f32.mrf.mxu0
      %v521 = vadd.f32 0.0, %v520
      %522 = vmatmul.f32.gmra.mxu0 %v444
      %v523 = vpop.f32.mrf.mxu0
      %v524 = vadd.f32 0.0, %v523
      %525 = vdwg.mxu0
      %526 = vst [vmem:[%s199] sm:$0xff] %v479
      %527 = vst [vmem:[%s199 + $0x8] sm:$0xff] %v482
      %528 = vst [vmem:[%s199 + $0x10] sm:$0xff] %v485
      %529 = vst [vmem:[%s199 + $0x18] sm:$0xff] %v488
      %530 = vst [vmem:[%s199 + $0x20] sm:$0xff] %v491
      %531 = vst [vmem:[%s199 + $0x28] sm:$0xff] %v494
      %532 = vst [vmem:[%s199 + $0x30] sm:$0xff] %v497
      %533 = vst [vmem:[%s199 + $0x38] sm:$0xff] %v500
      %534 = vst [vmem:[%s199 + $0x40] sm:$0xff] %v503
      %535 = vst [vmem:[%s199 + $0x48] sm:$0xff] %v506
      %536 = vst [vmem:[%s199 + $0x50] sm:$0xff] %v509
      %537 = vst [vmem:[%s199 + $0x58] sm:$0xff] %v512
      %538 = vst [vmem:[%s199 + $0x60] sm:$0xff] %v515
      %539 = vst [vmem:[%s199 + $0x68] sm:$0xff] %v518
      %540 = vst [vmem:[%s199 + $0x70] sm:$0xff] %v521
      %541 = vst [vmem:[%s199 + $0x78] sm:$0xff] %v524
      %s542 = smul.u32 16, %s15
      %p543 = scmp.lt.s32.totalorder %s542, 31
      %s544 = scalar_select %p543, %s542, 31
      %s545 = smul.addr %s544, 8
      %s546 = scalar_lea.vmem %s4, %s545
      // Predicated region
      $region37: #{dqn_forward.1} parent=35 // pred_check
        %p547 = pneg %p122
      $region38: #{dqn_forward.1} parent=35 // pred_check_branch
        %549 = sbr.rel (%p547) target = $region40
      $region39: #{dqn_forward.1} parent=35 // pred_region
        %s550 = smul.u32 16, %s15
      $region40: #{dqn_forward.1} parent=35 // pred_fallthru
        _
    $region36: #{dqn_forward.1} parent=5 // pred_fallthru
      _
    %p551 = scmp.le.s32.totalorder 2, %s10
    // Predicated region
    $region41: #{dqn_forward.1} parent=5 // pred_check
      %p552 = pneg %p551
    $region42: #{dqn_forward.1} parent=5 // pred_check_branch
      %554 = sbr.rel (%p552) target = $region44
    $region43: #{dqn_forward.1} parent=5 // pred_region
      %s555 = ssub.s32 %s10, 2
      // Predicated region
      $region45: #{dqn_forward.1} parent=43 // pred_check
        %p556 = pneg %p128
      $region46: #{dqn_forward.1} parent=43 // pred_check_branch
        %558 = sbr.rel (%p556) target = $region48
      $region47: #{dqn_forward.1} parent=43 // pred_region
        %s559 = smul.u32 16, %s16
        %p560 = scmp.lt.s32.totalorder %s559, 31
        %s561 = scalar_select %p560, %s559, 31
        %s562 = smul.addr %s561, 8
        %s563 = scalar_lea.vmem %s4, %s562
      $region48: #{dqn_forward.1} parent=43 // pred_fallthru
        _
    $region44: #{dqn_forward.1} parent=5 // pred_fallthru
      _
  $region6: #{dqn_forward.1} parent=0 // loop_footer
    %s14 = sadd.s32 1, %s10
  $region7: #{dqn_forward.1} parent=0 // loop_footer_branch
    %9 = sbr.rel target = $region3
  $region8: #{dqn_forward.1} parent=0 // loop_exit
    _

</llo_original>
